<compile_context>
chip_gen: v7x
topology: tpu7x:2x2x1
jax: 0.10.0
libtpu: 0.0.40
codegen_flags: <defaults>
</compile_context>

<pallas_src>
import math
import functools

import jax
import jax.numpy as jnp
from jax.experimental import pallas as pl
from jax.experimental.pallas import tpu as pltpu

NEG_INF = -1e9  # additive mask value (exp(-1e9) == 0; avoids NaN risk of true -inf)

# Tile targets (bf16 operands).  Working set per matmul step ~10 MiB with double buffering,
# safe on v5e/v6e (128 MiB) and v7x (64 MiB).
TILE_M = 512       # matmul rows per block (multiple of 8)
TILE_N = 1024      # matmul output features per block (multiple of 128, lane dense)
TILE_K = 1024      # matmul reduction depth per block (multiple of 128)
TILE_Q = 128       # attention query rows per block
TILE_KV = 256      # attention key rows per block
TILE_ROWS = 1024   # rows per block for LayerNorm kernel
FFN_RESIDENT_BYTES = 16 * 1024 * 1024  # keep w1+w2 resident in VMEM below this size


def _vmem_limit_bytes():
    try:
        info = pltpu.get_tpu_info()
        cap = getattr(info, "vmem_capacity_bytes", None)
        if cap:
            # 3/4 of physical, capped: ~96 MiB on v5e/v6e, ~48 MiB on v7x.
            return int(min(cap * 3 // 4, 96 * 1024 * 1024))
    except Exception:
        pass
    return None


_VMEM_LIMIT = _vmem_limit_bytes()


def _cp(dims):
    if _VMEM_LIMIT is None:
        return pltpu.CompilerParams(dimension_semantics=dims)
    return pltpu.CompilerParams(dimension_semantics=dims, vmem_limit_bytes=_VMEM_LIMIT)


def _tile_pad(dim, target, align):
    """Return (tile, padded_dim).  Prefers a reasonably large aligned divisor; otherwise pads
    the dim up to a multiple of the aligned target tile (never collapses to tiny tiles or a
    full-dim block that could exceed scoped VMEM)."""
    if dim <= target:
        return dim, dim
    t_max = (target // align) * align
    t = t_max
    while t >= max(align, t_max // 2):
        if dim % t == 0:
            return t, dim
        t -= align
    return t_max, ((dim + t_max - 1) // t_max) * t_max


def _pick_tile(dim, target, align):
    """Divisor-only tile pick for attention sequence dims (full-dim fallback)."""
    if dim <= target:
        return dim
    t = (target // align) * align
    while t >= align:
        if dim % t == 0:
            return t
        t -= align
    # TODO(synk): pad awkward sequence lengths instead of the full-dim fallback.
    return dim


# ----------------------------------------------------------------------------- tiled matmul (+bias)

def _matmul_kernel(x_ref, w_ref, b_ref, o_ref, acc_ref):
    @pl.when(pl.program_id(2) == 0)
    def _():
        acc_ref[...] = jnp.zeros_like(acc_ref)

    acc_ref[...] += jnp.dot(x_ref[...], w_ref[...], preferred_element_type=jnp.float32)

    @pl.when(pl.program_id(2) == pl.num_programs(2) - 1)
    def _():
        o_ref[...] = (acc_ref[...] + b_ref[...]).astype(o_ref.dtype)


def linear(x, w, b, out_dtype=jnp.bfloat16):
    """x: (..., K) @ w: (K, N) + b: (N,)  -- bf16 operands, f32 accumulation."""
    *lead, K = x.shape
    M = int(math.prod(lead)) if lead else 1
    N = w.shape[1]

    xm = x.reshape(M, K).astype(jnp.bfloat16)
    wm = w.astype(jnp.bfloat16)
    bm = b.astype(jnp.float32).reshape(1, N)

    tm, Mp = _tile_pad(M, TILE_M, 8)
    tn, Np = _tile_pad(N, TILE_N, 128)
    tk, Kp = _tile_pad(K, TILE_K, 128)
    if Mp != M:
        xm = jnp.pad(xm, ((0, Mp - M), (0, 0)))
    if Kp != K:
        xm = jnp.pad(xm, ((0, 0), (0, Kp - K)))
        wm = jnp.pad(wm, ((0, Kp - K), (0, 0)))
    if Np != N:
        wm = jnp.pad(wm, ((0, 0), (0, Np - N)))
        bm = jnp.pad(bm, ((0, 0), (0, Np - N)))

    # TODO(synk): sweep pl.Buffered(3) on the weight BlockSpec for the vocab-sized generator matmul.
    out = pl.pallas_call(
        _matmul_kernel,
        out_shape=jax.ShapeDtypeStruct((Mp, Np), out_dtype),
        grid=(Mp // tm, Np // tn, Kp // tk),
        in_specs=[
            pl.BlockSpec((tm, tk), lambda i, j, k: (i, k)),
            pl.BlockSpec((tk, tn), lambda i, j, k: (k, j)),
            pl.BlockSpec((1, tn), lambda i, j, k: (0, j)),
        ],
        out_specs=pl.BlockSpec((tm, tn), lambda i, j, k: (i, j)),
        scratch_shapes=[pltpu.VMEM((tm, tn), jnp.float32)],
        compiler_params=_cp(("parallel", "parallel", "arbitrary")),
    )(xm, wm, bm)
    return out[:M, :N].reshape(*lead, N)


# ----------------------------------------------------------------------------- matmul + residual + LayerNorm

def _linear_add_ln_kernel(x_ref, w_ref, b_ref, r_ref, g_ref, bb_ref, o_ref, *, eps):
    z = jnp.dot(x_ref[...], w_ref[...], preferred_element_type=jnp.float32)
    z = z + b_ref[...] + r_ref[...].astype(jnp.float32)
    mean = jnp.mean(z, axis=-1, keepdims=True)
    zc = z - mean
    var = jnp.mean(zc * zc, axis=-1, keepdims=True)
    zn = zc * jax.lax.rsqrt(var + eps)
    o_ref[...] = (zn * g_ref[...] + bb_ref[...]).astype(o_ref.dtype)


def linear_add_ln(x, w, b, residual, gamma, beta, eps=1e-5):
    """LayerNorm(residual + x @ w + b) fused (post-norm sublayer epilogue). w: (K, E), full E per block."""
    *lead, K = x.shape
    M = int(math.prod(lead)) if lead else 1
    E = w.shape[1]

    xm = x.reshape(M, K).astype(jnp.bfloat16)
    rm = residual.reshape(M, E).astype(jnp.bfloat16)
    tm, Mp = _tile_pad(M, TILE_M, 8)
    if Mp != M:
        xm = jnp.pad(xm, ((0, Mp - M), (0, 0)))
        rm = jnp.pad(rm, ((0, Mp - M), (0, 0)))

    out = pl.pallas_call(
        functools.partial(_linear_add_ln_kernel, eps=eps),
        out_shape=jax.ShapeDtypeStruct((Mp, E), jnp.bfloat16),
        grid=(Mp // tm,),
        in_specs=[
            pl.BlockSpec((tm, K), lambda i: (i, 0)),
            pl.BlockSpec((K, E), lambda i: (0, 0)),     # weight resident across row tiles
            pl.BlockSpec((1, E), lambda i: (0, 0)),
            pl.BlockSpec((tm, E), lambda i: (i, 0)),
            pl.BlockSpec((1, E), lambda i: (0, 0)),
            pl.BlockSpec((1, E), lambda i: (0, 0)),
        ],
        out_specs=pl.BlockSpec((tm, E), lambda i: (i, 0)),
        compiler_params=_cp(("parallel",)),
    )(xm, w.astype(jnp.bfloat16), b.astype(jnp.float32).reshape(1, E), rm,
      gamma.astype(jnp.float32).reshape(1, E), beta.astype(jnp.float32).reshape(1, E))
    return out[:M].reshape(*lead, E)


# ----------------------------------------------------------------------------- fused FFN + residual + LayerNorm

def _ffn_add_ln_kernel(x_ref, w1_ref, b1_ref, w2_ref, b2_ref, r_ref, g_ref, bb_ref, o_ref,
                       acc_ref, *, eps):
    @pl.when(pl.program_id(1) == 0)
    def _():
        acc_ref[...] = jnp.zeros_like(acc_ref)

    h = jnp.dot(x_ref[...], w1_ref[...], preferred_element_type=jnp.float32)
    h = jnp.maximum(h + b1_ref[...], 0.0).astype(x_ref.dtype)      # (tm, tf) relu stays in VMEM
    acc_ref[...] += jnp.dot(h, w2_ref[...], preferred_element_type=jnp.float32)

    @pl.when(pl.program_id(1) == pl.num_programs(1) - 1)
    def _():
        z = acc_ref[...] + b2_ref[...] + r_ref[...].astype(jnp.float32)
        mean = jnp.mean(z, axis=-1, keepdims=True)
        zc = z - mean
        var = jnp.mean(zc * zc, axis=-1, keepdims=True)
        zn = zc * jax.lax.rsqrt(var + eps)
        o_ref[...] = (zn * g_ref[...] + bb_ref[...]).astype(o_ref.dtype)


def ffn_add_ln(x, w1, b1, w2, b2, residual, gamma, beta, eps=1e-5):
    """LayerNorm(residual + linear2(relu(linear1(x)))) with the dff intermediate kept in VMEM."""
    *lead, E = x.shape
    M = int(math.prod(lead)) if lead else 1
    dff = w1.shape[1]

    xm = x.reshape(M, E).astype(jnp.bfloat16)
    rm = residual.reshape(M, E).astype(jnp.bfloat16)
    w1m = w1.astype(jnp.bfloat16)
    w2m = w2.astype(jnp.bfloat16)
    b1m = b1.astype(jnp.float32).reshape(1, dff)

    tm, Mp = _tile_pad(M, TILE_M, 8)
    if 2 * E * dff * 2 <= FFN_RESIDENT_BYTES:
        tf, dffp = dff, dff            # weights index-map-constant -> fetched from HBM once
    else:
        tf, dffp = _tile_pad(dff, TILE_N, 128)
    if Mp != M:
        xm = jnp.pad(xm, ((0, Mp - M), (0, 0)))
        rm = jnp.pad(rm, ((0, Mp - M), (0, 0)))
    if dffp != dff:
        w1m = jnp.pad(w1m, ((0, 0), (0, dffp - dff)))
        b1m = jnp.pad(b1m, ((0, 0), (0, dffp - dff)))
        w2m = jnp.pad(w2m, ((0, dffp - dff), (0, 0)))

    out = pl.pallas_call(
        functools.partial(_ffn_add_ln_kernel, eps=eps),
        out_shape=jax.ShapeDtypeStruct((Mp, E), jnp.bfloat16),
        grid=(Mp // tm, dffp // tf),
        in_specs=[
            pl.BlockSpec((tm, E), lambda i, j: (i, 0)),
            pl.BlockSpec((E, tf), lambda i, j: (0, j)),
            pl.BlockSpec((1, tf), lambda i, j: (0, j)),
            pl.BlockSpec((tf, E), lambda i, j: (j, 0)),
            pl.BlockSpec((1, E), lambda i, j: (0, 0)),
            pl.BlockSpec((tm, E), lambda i, j: (i, 0)),
            pl.BlockSpec((1, E), lambda i, j: (0, 0)),
            pl.BlockSpec((1, E), lambda i, j: (0, 0)),
        ],
        out_specs=pl.BlockSpec((tm, E), lambda i, j: (i, 0)),
        scratch_shapes=[pltpu.VMEM((tm, E), jnp.float32)],
        compiler_params=_cp(("parallel", "arbitrary")),
    )(xm, w1m, b1m, w2m, b2.astype(jnp.float32).reshape(1, E), rm,
      gamma.astype(jnp.float32).reshape(1, E), beta.astype(jnp.float32).reshape(1, E))
    return out[:M].reshape(*lead, E)


# ----------------------------------------------------------------------------- flash attention (online softmax)

def _flash_attn_kernel(q_ref, k_ref, v_ref, am_ref, kp_ref, o_ref, m_sc, l_sc, acc_sc, *, scale):
    ki = pl.program_id(2)

    @pl.when(ki == 0)
    def _():
        m_sc[...] = jnp.full_like(m_sc, -jnp.inf)
        l_sc[...] = jnp.zeros_like(l_sc)
        acc_sc[...] = jnp.zeros_like(acc_sc)

    q = q_ref[0]                                         # (H, tq, Dh) bf16
    k = k_ref[0]                                         # (H, tk, Dh) bf16
    v = v_ref[0]                                         # (H, tk, Dh) bf16
    s = jnp.einsum('hqd,hkd->hqk', q, k, preferred_element_type=jnp.float32) * scale
    bias = am_ref[...] + kp_ref[0]                       # (tq, tk) + (1, tk) -> (tq, tk)
    s = s + bias[None, :, :]                             # shared across heads

    m_prev = m_sc[...]
    m_new = jnp.maximum(m_prev, jnp.max(s, axis=-1, keepdims=True))
    alpha = jnp.exp(m_prev - m_new)
    p = jnp.exp(s - m_new)
    l_sc[...] = alpha * l_sc[...] + jnp.sum(p, axis=-1, keepdims=True)
    acc_sc[...] = alpha * acc_sc[...] + jnp.einsum(
        'hqk,hkd->hqd', p.astype(v.dtype), v, preferred_element_type=jnp.float32)
    m_sc[...] = m_new

    @pl.when(ki == pl.num_programs(2) - 1)
    def _():
        o_ref[0] = (acc_sc[...] * pl.reciprocal(l_sc[...], approx=True)).astype(o_ref.dtype)


def flash_attention(q, k, v, attn_mask, kpad_bias, scale):
    """q: (B,H,Lq,Dh), k/v: (B,H,Lk,Dh), attn_mask: (Lq,Lk) f32 additive, kpad_bias: (B,1,Lk) f32."""
    B, H, Lq, Dh = q.shape
    Lk = k.shape[2]
    tq = _pick_tile(Lq, TILE_Q, 8)
    tk = _pick_tile(Lk, TILE_KV, 128)
    return pl.pallas_call(
        functools.partial(_flash_attn_kernel, scale=scale),
        out_shape=jax.ShapeDtypeStruct((B, H, Lq, Dh), q.dtype),
        grid=(B, Lq // tq, Lk // tk),
        in_specs=[
            pl.BlockSpec((1, H, tq, Dh), lambda b, qi, ki: (b, 0, qi, 0)),
            pl.BlockSpec((1, H, tk, Dh), lambda b, qi, ki: (b, 0, ki, 0)),
            pl.BlockSpec((1, H, tk, Dh), lambda b, qi, ki: (b, 0, ki, 0)),
            pl.BlockSpec((tq, tk), lambda b, qi, ki: (qi, ki)),
            pl.BlockSpec((1, 1, tk), lambda b, qi, ki: (b, 0, ki)),
        ],
        out_specs=pl.BlockSpec((1, H, tq, Dh), lambda b, qi, ki: (b, 0, qi, 0)),
        scratch_shapes=[pltpu.VMEM((H, tq, 1), jnp.float32),
                        pltpu.VMEM((H, tq, 1), jnp.float32),
                        pltpu.VMEM((H, tq, Dh), jnp.float32)],
        compiler_params=_cp(("parallel", "parallel", "arbitrary")),
    )(q, k, v, attn_mask, kpad_bias)


# ----------------------------------------------------------------------------- LayerNorm (final encoder/decoder norm)

def _ln_kernel(x_ref, g_ref, b_ref, o_ref, *, eps):
    z = x_ref[...].astype(jnp.float32)
    mean = jnp.mean(z, axis=-1, keepdims=True)
    zc = z - mean
    var = jnp.mean(zc * zc, axis=-1, keepdims=True)
    o_ref[...] = (zc * jax.lax.rsqrt(var + eps) * g_ref[...] + b_ref[...]).astype(o_ref.dtype)


def layernorm(x, gamma, beta, eps=1e-5):
    *lead, E = x.shape
    M = int(math.prod(lead)) if lead else 1
    xm = x.reshape(M, E)
    tm, Mp = _tile_pad(M, TILE_ROWS, 8)
    if Mp != M:
        xm = jnp.pad(xm, ((0, Mp - M), (0, 0)))
    out = pl.pallas_call(
        functools.partial(_ln_kernel, eps=eps),
        out_shape=jax.ShapeDtypeStruct((Mp, E), x.dtype),
        grid=(Mp // tm,),
        in_specs=[pl.BlockSpec((tm, E), lambda i: (i, 0)),
                  pl.BlockSpec((1, E), lambda i: (0, 0)),
                  pl.BlockSpec((1, E), lambda i: (0, 0))],
        out_specs=pl.BlockSpec((tm, E), lambda i: (i, 0)),
        compiler_params=_cp(("parallel",)),
    )(xm, gamma.astype(jnp.float32).reshape(1, E), beta.astype(jnp.float32).reshape(1, E))
    return out[:M].reshape(*lead, E)


# ----------------------------------------------------------------------------- model glue

def split_heads(x, nhead):
    L, B, E = x.shape
    return x.reshape(L, B, nhead, E // nhead).transpose(1, 2, 0, 3)   # (B, H, L, Dh)


def merge_heads(x):
    B, H, L, Dh = x.shape
    return x.transpose(2, 0, 1, 3).reshape(L, B, H * Dh)              # (L, B, E)


def _attn_mask_f32(attn_mask, Lq, Lk):
    if attn_mask is None:
        return jnp.zeros((Lq, Lk), jnp.float32)
    return attn_mask.astype(jnp.float32)


def _kpad_bias(key_padding_mask, B, Lk):
    if key_padding_mask is None:
        return jnp.zeros((B, 1, Lk), jnp.float32)
    return jnp.where(key_padding_mask, NEG_INF, 0.0).astype(jnp.float32).reshape(B, 1, Lk)


def mha_add_ln(query, key_value, p, nhead, attn_mask, kpad_bias, ln_g, ln_b, *, self_attn):
    """Full post-norm attention sublayer: LN(query + out_proj(attention(query, kv)))."""
    Lq, B, E = query.shape
    Dh = E // nhead
    if self_attn:                                       # one (E, 3E) matmul
        qkv = linear(query, p["w_in"], p["b_in"])
        q, k, v = jnp.split(qkv, 3, axis=-1)
    else:                                               # q alone, fused kv
        q = linear(query, p["w_in"][:, :E], p["b_in"][:E])
        kv = linear(key_value, p["w_in"][:, E:], p["b_in"][E:])
        k, v = jnp.split(kv, 2, axis=-1)
    # TODO(synk): head split/merge still round-trips HBM via XLA transposes; reading head slices
    # directly from the (L,B,E) projection needs Dh to be a 128-lane multiple.
    oh = flash_attention(split_heads(q, nhead), split_heads(k, nhead), split_heads(v, nhead),
                         attn_mask, kpad_bias, 1.0 / math.sqrt(Dh))
    return linear_add_ln(merge_heads(oh), p["wo"], p["bo"], query, ln_g, ln_b)


def encoder_layer(x, p, nhead, attn_mask, kpad):
    x = mha_add_ln(x, x, p["self_attn"], nhead, attn_mask, kpad,
                   p["ln1_g"], p["ln1_b"], self_attn=True)
    x = ffn_add_ln(x, p["w1"], p["b1"], p["w2"], p["b2"], x, p["ln2_g"], p["ln2_b"])
    return x


def decoder_layer(x, memory, p, nhead, self_am, self_kp, cross_am, cross_kp):
    x = mha_add_ln(x, x, p["self_attn"], nhead, self_am, self_kp,
                   p["ln1_g"], p["ln1_b"], self_attn=True)
    x = mha_add_ln(x, memory, p["cross_attn"], nhead, cross_am, cross_kp,
                   p["ln2_g"], p["ln2_b"], self_attn=False)
    x = ffn_add_ln(x, p["w1"], p["b1"], p["w2"], p["b2"], x, p["ln3_g"], p["ln3_b"])
    return x


def embed_and_posenc(tokens, table, pos_buf, emb_size):
    # gather + scale + positional add stay one fused XLA elementwise epilogue (no extra HBM pass)
    e = table[tokens] * math.sqrt(emb_size) + pos_buf[: tokens.shape[0]]
    return e.astype(jnp.bfloat16)


def seq2seq_forward(params, src, tgt, src_mask, tgt_mask,
                    src_padding_mask, tgt_padding_mask, memory_key_padding_mask):
    cfg = params["cfg"]
    E, H = cfg["emb_size"], cfg["nhead"]
    S, B = src.shape
    T = tgt.shape[0]

    src_emb = embed_and_posenc(src, params["src_emb"], params["pos"], E)
    tgt_emb = embed_and_posenc(tgt, params["tgt_emb"], params["pos"], E)

    # --- encoder stack (post-LN) ---
    enc_am = _attn_mask_f32(src_mask, S, S)
    enc_kp = _kpad_bias(src_padding_mask, B, S)
    x = src_emb
    for lp in params["enc_layers"]:
        x = encoder_layer(x, lp, H, enc_am, enc_kp)
    memory = layernorm(x, params["enc_norm_g"], params["enc_norm_b"])

    # --- decoder stack (post-LN) ---
    dec_self_am = _attn_mask_f32(tgt_mask, T, T)
    dec_self_kp = _kpad_bias(tgt_padding_mask, B, T)
    dec_cross_am = _attn_mask_f32(None, T, S)
    dec_cross_kp = _kpad_bias(memory_key_padding_mask, B, S)
    y = tgt_emb
    for lp in params["dec_layers"]:
        y = decoder_layer(y, memory, lp, H, dec_self_am, dec_self_kp, dec_cross_am, dec_cross_kp)
    y = layernorm(y, params["dec_norm_g"], params["dec_norm_b"])

    # --- generator (vocab-tiled matmul, f32 logits) ---
    return linear(y, params["gen_w"], params["gen_b"], out_dtype=jnp.float32)   # (T, B, tgt_vocab)


# ----------------------------------------------------------------------------- parameter init

def make_pos_embedding(emb_size, maxlen):
    den = jnp.exp(-jnp.arange(0, emb_size, 2, dtype=jnp.float32) * math.log(10000.0) / emb_size)
    pos = jnp.arange(0, maxlen, dtype=jnp.float32).reshape(maxlen, 1)
    pe = jnp.zeros((maxlen, emb_size), jnp.float32)
    pe = pe.at[:, 0::2].set(jnp.sin(pos * den))
    pe = pe.at[:, 1::2].set(jnp.cos(pos * den))
    return pe[:, None, :]                                          # (maxlen, 1, E)


def init_params(key, num_enc, num_dec, emb, nhead, src_vocab, tgt_vocab, dff, maxlen=256):
    keys = iter(jax.random.split(key, 1024))

    def dense(fan_in, fan_out):
        w = jax.random.normal(next(keys), (fan_in, fan_out), jnp.float32) * 0.02
        return w.astype(jnp.bfloat16)                              # MXU-facing weights stored bf16

    def attn_params():
        return {"w_in": dense(emb, 3 * emb), "b_in": jnp.zeros((3 * emb,), jnp.float32),
                "wo": dense(emb, emb), "bo": jnp.zeros((emb,), jnp.float32)}

    def enc_layer_params():
        return {"self_attn": attn_params(),
                "w1": dense(emb, dff), "b1": jnp.zeros((dff,), jnp.float32),
                "w2": dense(dff, emb), "b2": jnp.zeros((emb,), jnp.float32),
                "ln1_g": jnp.ones((emb,), jnp.float32), "ln1_b": jnp.zeros((emb,), jnp.float32),
                "ln2_g": jnp.ones((emb,), jnp.float32), "ln2_b": jnp.zeros((emb,), jnp.float32)}

    def dec_layer_params():
        p = enc_layer_params()
        p["cross_attn"] = attn_params()
        p["ln3_g"] = jnp.ones((emb,), jnp.float32)
        p["ln3_b"] = jnp.zeros((emb,), jnp.float32)
        return p

    return {
        "cfg": {"emb_size": emb, "nhead": nhead},
        "src_emb": jax.random.normal(next(keys), (src_vocab, emb), jnp.float32),
        "tgt_emb": jax.random.normal(next(keys), (tgt_vocab, emb), jnp.float32),
        "pos": make_pos_embedding(emb, maxlen),
        "enc_layers": [enc_layer_params() for _ in range(num_enc)],
        "dec_layers": [dec_layer_params() for _ in range(num_dec)],
        "enc_norm_g": jnp.ones((emb,), jnp.float32), "enc_norm_b": jnp.zeros((emb,), jnp.float32),
        "dec_norm_g": jnp.ones((emb,), jnp.float32), "dec_norm_b": jnp.zeros((emb,), jnp.float32),
        "gen_w": dense(emb, tgt_vocab), "gen_b": jnp.zeros((tgt_vocab,), jnp.float32),
    }


# ----------------------------------------------------------------------------- main

if __name__ == "__main__":
    # small config consistent with the module's __init__
    NUM_ENC, NUM_DEC = 2, 2
    EMB, NHEAD = 32, 4
    SRC_VOCAB, TGT_VOCAB = 50, 60
    DFF = 64
    S, T, B = 8, 7, 2

    key = jax.random.PRNGKey(0)
    kp, ks, kt = jax.random.split(key, 3)

    params = init_params(kp, NUM_ENC, NUM_DEC, EMB, NHEAD, SRC_VOCAB, TGT_VOCAB, DFF)

    src = jax.random.randint(ks, (S, B), 0, SRC_VOCAB, dtype=jnp.int32)   # (S, B) tokens
    tgt = jax.random.randint(kt, (T, B), 0, TGT_VOCAB, dtype=jnp.int32)   # (T, B) tokens

    # src_mask: all-zero float (no masking); tgt_mask: causal additive
    src_mask = jnp.zeros((S, S), jnp.float32)
    tgt_mask = jnp.where(jnp.arange(T)[None, :] > jnp.arange(T)[:, None], NEG_INF, 0.0)

    # key-padding masks (True = padded); batch 1 has two padded src positions, one padded tgt pos
    src_padding_mask = jnp.array([[False] * S,
                                  [False] * (S - 2) + [True, True]])
    tgt_padding_mask = jnp.array([[False] * T,
                                  [False] * (T - 1) + [True]])
    memory_key_padding_mask = src_padding_mask

    out = seq2seq_forward(params, src, tgt, src_mask, tgt_mask,
                          src_padding_mask, tgt_padding_mask, memory_key_padding_mask)
    out = jax.block_until_ready(out)

    assert out.shape == (T, B, TGT_VOCAB), out.shape
    assert bool(jnp.all(jnp.isfinite(out)))
    print("KERNEL_OK")
</pallas_src>

<mosaic_0001>
module attributes {stable_mosaic.version = 11 : i64} {
  func.func @_matmul_kernel(%arg0: i32, %arg1: i32, %arg2: i32, %arg3: memref<16x32xbf16, #tpu.memory_space<vmem>>, %arg4: memref<32x96xbf16, #tpu.memory_space<vmem>>, %arg5: memref<1x96xf32, #tpu.memory_space<vmem>>, %arg6: memref<16x96xbf16, #tpu.memory_space<vmem>>, %arg7: memref<16x96xf32, #tpu.memory_space<vmem>>) attributes {dimension_semantics = [#tpu.dimension_semantics<parallel>, #tpu.dimension_semantics<parallel>, #tpu.dimension_semantics<arbitrary>], iteration_bounds = array<i64: 1, 1, 1>, scalar_prefetch = 0 : i64, scratch_operands = 1 : i64, tpu.core_type = #tpu.core_type<tc>, window_params = [{transform_indices = @transform_0, window_bounds = array<i64: 16, 32>}, {transform_indices = @transform_1, window_bounds = array<i64: 32, 96>}, {transform_indices = @transform_2, window_bounds = array<i64: 1, 96>}, {transform_indices = @transform_3, window_bounds = array<i64: 16, 96>}]} {
    %c0_i32 = arith.constant 0 : i32
    %0 = arith.cmpi eq, %arg2, %c0_i32 : i32
    %1 = arith.extui %0 : i1 to i32
    %c0_i32_0 = arith.constant 0 : i32
    %2 = arith.cmpi ne, %1, %c0_i32_0 : i32
    scf.if %2 {
      %cst_10 = arith.constant 0.000000e+00 : f32
      %12 = vector.broadcast %cst_10 : f32 to vector<16x96xf32>
      %c0_11 = arith.constant 0 : index
      %c0_12 = arith.constant 0 : index
      %13 = vector.load %arg7[%c0_11, %c0_12] : memref<16x96xf32, #tpu.memory_space<vmem>>, vector<16x96xf32>
      tpu.vector_store %arg7[%c0_11, %c0_12], %12 {strides = array<i32>} : memref<16x96xf32, #tpu.memory_space<vmem>>, vector<16x96xf32>,
    } else {
    }
    %c0 = arith.constant 0 : index
    %c0_1 = arith.constant 0 : index
    %3 = vector.load %arg7[%c0, %c0_1] : memref<16x96xf32, #tpu.memory_space<vmem>>, vector<16x96xf32>
    %c0_2 = arith.constant 0 : index
    %c0_3 = arith.constant 0 : index
    %4 = vector.load %arg3[%c0_2, %c0_3] : memref<16x32xbf16, #tpu.memory_space<vmem>>, vector<16x32xbf16>
    %c0_4 = arith.constant 0 : index
    %c0_5 = arith.constant 0 : index
    %5 = vector.load %arg4[%c0_4, %c0_5] : memref<32x96xbf16, #tpu.memory_space<vmem>>, vector<32x96xbf16>
    %cst = arith.constant dense<0.000000e+00> : vector<16x96xf32>
    %6 = tpu.matmul %4, %5, %cst {dimension_numbers = #tpu.dot_dimension_numbers<[1], [0], [0], [1], [0, 0, 1, 1], [], []>} : vector<16x32xbf16>, vector<32x96xbf16>, vector<16x96xf32> -> vector<16x96xf32>
    %7 = arith.addf %3, %6 : vector<16x96xf32>
    %c0_6 = arith.constant 0 : index
    %c0_7 = arith.constant 0 : index
    %8 = vector.load %arg7[%c0_6, %c0_7] : memref<16x96xf32, #tpu.memory_space<vmem>>, vector<16x96xf32>
    tpu.vector_store %arg7[%c0_6, %c0_7], %7 {strides = array<i32>} : memref<16x96xf32, #tpu.memory_space<vmem>>, vector<16x96xf32>,
    %c0_i32_8 = arith.constant 0 : i32
    %9 = arith.cmpi eq, %arg2, %c0_i32_8 : i32
    %10 = arith.extui %9 : i1 to i32
    %c0_i32_9 = arith.constant 0 : i32
    %11 = arith.cmpi ne, %10, %c0_i32_9 : i32
    scf.if %11 {
      %c0_10 = arith.constant 0 : index
      %c0_11 = arith.constant 0 : index
      %12 = vector.load %arg7[%c0_10, %c0_11] : memref<16x96xf32, #tpu.memory_space<vmem>>, vector<16x96xf32>
      %c0_12 = arith.constant 0 : index
      %c0_13 = arith.constant 0 : index
      %13 = vector.load %arg5[%c0_12, %c0_13] : memref<1x96xf32, #tpu.memory_space<vmem>>, vector<1x96xf32>
      %14 = vector.broadcast %13 : vector<1x96xf32> to vector<16x96xf32>
      %15 = arith.addf %12, %14 : vector<16x96xf32>
      %16 = arith.truncf %15 : vector<16x96xf32> to vector<16x96xbf16>
      %c0_14 = arith.constant 0 : index
      %c0_15 = arith.constant 0 : index
      %17 = vector.load %arg6[%c0_14, %c0_15] : memref<16x96xbf16, #tpu.memory_space<vmem>>, vector<16x96xbf16>
      tpu.vector_store %arg6[%c0_14, %c0_15], %16 {strides = array<i32>} : memref<16x96xbf16, #tpu.memory_space<vmem>>, vector<16x96xbf16>,
    } else {
    }
    return
  }
  func.func @transform_0(%arg0: i32, %arg1: i32, %arg2: i32) -> (i32, i32) {
    %c0_i32 = arith.constant 0 : i32
    return %arg0, %arg2 : i32, i32
  }
  func.func @transform_1(%arg0: i32, %arg1: i32, %arg2: i32) -> (i32, i32) {
    %c0_i32 = arith.constant 0 : i32
    return %arg2, %arg1 : i32, i32
  }
  func.func @transform_2(%arg0: i32, %arg1: i32, %arg2: i32) -> (i32, i32) {
    %c0_i32 = arith.constant 0 : i32
    %c0_i32_0 = arith.constant 0 : i32
    return %c0_i32, %arg1 : i32, i32
  }
  func.func @transform_3(%arg0: i32, %arg1: i32, %arg2: i32) -> (i32, i32) {
    %c0_i32 = arith.constant 0 : i32
    return %arg0, %arg1 : i32, i32
  }
}

</mosaic_0001>

<llo_original>
// kernel: tpu_custom_call.1
$region0: #{tpu_custom_call.1}
  #allocation0 [shape = 'u32[]', space=smem, size = 0x4, offset = 0x4, fixed_abs, tag = 'smem constant byte address 0x4 - core index']
  #allocation1 [shape = 'u32[144,128]{1,0:T(1,128)}', space=vmem, size = 0x12000, scoped, tag = 'internal scratch']
  #allocation2 [shape = 'f32[16,96]{1,0:T(8,128)}', space=vmem, size = 0x2000, scoped, tag = 'scratch operand']
  %s0 = inlined_call_operand.hbm [shape: bf16[16,32], index: 0, kind: input, shape index: {}]
  %s1 = inlined_call_operand.hbm [shape: bf16[32,96], index: 1, kind: input, shape index: {}]
  %s2 = inlined_call_operand.vmem [shape: f32[1,96], index: 2, kind: input, shape index: {}]
  %s3 = inlined_call_operand.hbm [shape: bf16[16,96], index: 3, kind: output, shape index: {}]
  %s4 = sld [smem:[#allocation0]]
  $region38: #{tpu_custom_call.1} parent=0
    _
  %s6 = ssub.s32 1, %s4
  %s7 = scalar_select 0, %s6, %s4
  $region1: #{tpu_custom_call.1} parent=0
    #allocation3 [shape = 'u8[4096]{0}', space=vmem, size = 0x1000, scoped, tag = 'input window, operand 0, single buffered']
    #allocation4 [shape = 's32[1]{0}', space=sflag, size = 0x4, scoped, tag = 'scoped memory for tpu_custom_call.1']
    #allocation5 [shape = 's32[1]{0}', space=sflag, size = 0x4, scoped, tag = 'scoped memory for tpu_custom_call.1']
    #allocation6 [shape = 'u8[8192]{0}', space=vmem, size = 0x2000, scoped, tag = 'input window, operand 1, single buffered']
    #allocation7 [shape = 's32[1]{0}', space=sflag, size = 0x4, scoped, tag = 'scoped memory for tpu_custom_call.1']
    #allocation8 [shape = 'u8[4096]{0}', space=vmem, size = 0x1000, scoped, tag = 'output window, operand 0, single buffered']
    %8 = vsyncpa [#allocation4], 0
    %9 = vsyncpa [#allocation7], 0
    %10 = vsyncpa [#allocation5], 0
    // Predicated region
    $region2: #{tpu_custom_call.1} parent=1 // pred_check
      _
    $region3: #{tpu_custom_call.1} parent=1 // pred_check_branch
      %12 = sbr.rel (0) target = $region5
    $region4: #{tpu_custom_call.1} parent=1 // pred_region
      %s14 = ssub.s32 128, 128
      %15 = vsyncadd [#allocation4], %s14
      %s16 = sshll.u32 [#allocation3], 4
      %s17 = int_to_ptr.vmem [resolvable:$true] %s16
      %22 = dma.hbm_to_vmem [thread:$0]  %s0, 128, %s17, [#allocation4], 64, 64, 4
    $region5: #{tpu_custom_call.1} parent=1 // pred_fallthru
      _
    // Predicated region
    $region6: #{tpu_custom_call.1} parent=1 // pred_check
      _
    $region7: #{tpu_custom_call.1} parent=1 // pred_check_branch
      %24 = sbr.rel (0) target = $region9
    $region8: #{tpu_custom_call.1} parent=1 // pred_region
      %s26 = ssub.s32 256, 256
      %27 = vsyncadd [#allocation7], %s26
      %s28 = sshll.u32 [#allocation6], 4
      %s29 = int_to_ptr.vmem [resolvable:$true] %s28
      %34 = dma.hbm_to_vmem [thread:$0]  %s1, 256, %s29, [#allocation7], 64, 64, 4
    $region9: #{tpu_custom_call.1} parent=1 // pred_fallthru
      _
    // Predicated region
    $region10: #{tpu_custom_call.1} parent=1 // pred_check
      _
    $region11: #{tpu_custom_call.1} parent=1 // pred_check_branch
      %36 = sbr.rel (0) target = $region13
    $region12: #{tpu_custom_call.1} parent=1 // pred_region
      _
    $region13: #{tpu_custom_call.1} parent=1 // pred_fallthru
      _
    // Predicated region
    $region14: #{tpu_custom_call.1} parent=1 // pred_check
      _
    $region15: #{tpu_custom_call.1} parent=1 // pred_check_branch
      %38 = sbr.rel (0) target = $region17
    $region16: #{tpu_custom_call.1} parent=1 // pred_region
      %39 = dma.done [#allocation4], 128
    $region17: #{tpu_custom_call.1} parent=1 // pred_fallthru
      _
    // Predicated region
    $region18: #{tpu_custom_call.1} parent=1 // pred_check
      _
    $region19: #{tpu_custom_call.1} parent=1 // pred_check_branch
      %41 = sbr.rel (0) target = $region21
    $region20: #{tpu_custom_call.1} parent=1 // pred_region
      %42 = dma.done [#allocation7], 256
    $region21: #{tpu_custom_call.1} parent=1 // pred_fallthru
      _
    %p44 = scmp.eq.s32.totalorder 0, 0
    // Predicated region
    $region22: #{tpu_custom_call.1} parent=1 // pred_check
      %p45 = pneg %p44
    $region23: #{tpu_custom_call.1} parent=1 // pred_check_branch
      %47 = sbr.rel (%p45) target = $region25
    $region24: #{tpu_custom_call.1} parent=1 // pred_region
      %vm48 = vcmask 785408
      %49 = vst.msk [vmem:[#allocation2] sm:$0xff] %vm48, 0.0
      %50 = vst.msk [vmem:[#allocation2 + $0x8] sm:$0xff] %vm48, 0.0
    $region25: #{tpu_custom_call.1} parent=1 // pred_fallthru
      _
    %v51 = vld [vmem:[#allocation2] sm:$0xff]
    %v52 = vld [vmem:[#allocation2 + $0x8] sm:$0xff]
    %v53 = vld [vmem:[#allocation3] sm:$0xf]
    %v54 = vld [vmem:[#allocation3 + $0x4] sm:$0xf]
    %v55 = vld [vmem:[#allocation6] sm:$0xf]
    %v56 = vld [vmem:[#allocation6 + $0x4] sm:$0xf]
    %v57 = vld [vmem:[#allocation6 + $0x8] sm:$0xf]
    %v58 = vld [vmem:[#allocation6 + $0xc] sm:$0xf]
    %v61 = vunpack.c.l.b16 %v53
    %v62 = vunpack.c.l.b16 %v54
    %v63 = vpack.c.b16 %v62, %v61
    %v68 = vunpack.c.l.b16 %v55
    %v69 = vunpack.c.l.b16 %v56
    %v70 = vunpack.c.l.b16 %v57
    %v71 = vunpack.c.l.b16 %v58
    %v72 = vpack.c.b16 %v69, %v68
    %v73 = vpack.c.b16 %v71, %v70
    %vm76 = vcmask 261120
    %v78 = vsel %vm76, %v63, 0
    %80 = vmatprep.subr.bf16.mxu0 0
    %81 = vmatpush1.bf16.msra.mxu0 %v72
    %82 = vmatprep.subr.bf16.mxu0 0
    %83 = vmatpush1.bf16.msra.mxu0 %v73
    %84 = vmatprep.subr.bf16.mxu0 0
    %85 = vmatpush1.bf16.msra.mxu0 0
    %86 = vmatprep.subr.bf16.mxu0 0
    %87 = vmatpush1.bf16.msra.mxu0 0
    %88 = vmatprep.subr.bf16.mxu0 0
    %89 = vmatpush1.bf16.msra.mxu0 0
    %90 = vmatprep.subr.bf16.mxu0 0
    %91 = vmatpush1.bf16.msra.mxu0 0
    %92 = vmatprep.subr.bf16.mxu0 0
    %93 = vmatpush1.bf16.msra.mxu0 0
    %94 = vmatprep.subr.bf16.mxu0 0
    %95 = vmatpush1.bf16.msra.mxu0 0
    %96 = vmatprep.subr.bf16.mxu0 0
    %97 = vmatpush1.bf16.msra.mxu0 0
    %98 = vmatprep.subr.bf16.mxu0 0
    %99 = vmatpush1.bf16.msra.mxu0 0
    %100 = vmatprep.subr.bf16.mxu0 0
    %101 = vmatpush1.bf16.msra.mxu0 0
    %102 = vmatprep.subr.bf16.mxu0 0
    %103 = vmatpush1.bf16.msra.mxu0 0
    %104 = vmatprep.subr.bf16.mxu0 0
    %105 = vmatpush1.bf16.msra.mxu0 0
    %106 = vmatprep.subr.bf16.mxu0 0
    %107 = vmatpush1.bf16.msra.mxu0 0
    %108 = vmatprep.subr.bf16.mxu0 0
    %109 = vmatpush1.bf16.msra.mxu0 0
    %110 = vmatprep.subr.bf16.mxu0 0
    %111 = vmatpush1.bf16.msra.mxu0 0
    %112 = vmatprep.mubr.bf16.mxu0 0
    %113 = vmatmul.mubr.bf16.gmra.mrb[0].mxu0 %v78
    %v114 = vpop.f32.mrb[0].mxu0
    %v115 = vadd.f32 0.0, %v114
    %v116 = vpop.f32.mrb[0].mxu0
    %v117 = vpop.f32.mrb[0].mxu0
    %v118 = vadd.f32 0.0, %v117
    %v119 = vpop.f32.mrb[0].mxu0
    %120 = vdwg.mxu0
    %v121 = vadd.f32 %v51, %v115
    %v122 = vadd.f32 %v52, %v118
    %vm123 = vcmask 785408
    %124 = vst.msk [vmem:[#allocation2] sm:$0xff] %vm123, %v121
    %125 = vst.msk [vmem:[#allocation2 + $0x8] sm:$0xff] %vm123, %v122
    // Predicated region
    $region26: #{tpu_custom_call.1} parent=1 // pred_check
      %p126 = pneg %p44
    $region27: #{tpu_custom_call.1} parent=1 // pred_check_branch
      %128 = sbr.rel (%p126) target = $region29
    $region28: #{tpu_custom_call.1} parent=1 // pred_region
      %v129 = vld [vmem:[#allocation2] sm:$0xff]
      %v130 = vld [vmem:[#allocation2 + $0x8] sm:$0xff]
      %v131 = vld [vmem:[%s2] sm:$0x1]
      %v133 = vlaneseq
      %v134 = vshrl.u32 %v133, 7
      %v135 = vsub.s32 0, %v134
      %v136 = vrot.slane %v131, %v135
      %v138 = vadd.f32 %v129, %v136
      %v139 = vadd.f32 %v130, %v136
      %v140 = vpack.c.bf16 %v139, %v138
      %v142 = vunpack.c.l.b16 %v140
      %v143 = vunpack.c.h.b16 %v140
      %v144 = vpack.c.b16 %v142, %v142
      %v145 = vpack.c.b16 %v143, %v143
      %vm148 = vcmask 781312
      %149 = vst.msk [vmem:[#allocation8] sm:$0xf] %vm148, %v144
      %150 = vst.msk [vmem:[#allocation8 + $0x4] sm:$0xf] %vm148, %v145
    $region29: #{tpu_custom_call.1} parent=1 // pred_fallthru
      _
    // Predicated region
    $region30: #{tpu_custom_call.1} parent=1 // pred_check
      _
    $region31: #{tpu_custom_call.1} parent=1 // pred_check_branch
      %152 = sbr.rel (0) target = $region33
    $region32: #{tpu_custom_call.1} parent=1 // pred_region
      %s154 = ssub.s32 128, 128
      %155 = vsyncadd [#allocation5], %s154
      %s156 = sshll.u32 [#allocation8], 4
      %s157 = int_to_ptr.vmem [resolvable:$true] %s156
      %162 = dma.vmem_to_hbm [thread:$0]  %s157, 128, %s3, [#allocation5], 64, 64, 4
    $region33: #{tpu_custom_call.1} parent=1 // pred_fallthru
      _
    // Predicated region
    $region34: #{tpu_custom_call.1} parent=1 // pred_check
      _
    $region35: #{tpu_custom_call.1} parent=1 // pred_check_branch
      %164 = sbr.rel (0) target = $region37
    $region36: #{tpu_custom_call.1} parent=1 // pred_region
      %165 = dma.done [#allocation5], 128
    $region37: #{tpu_custom_call.1} parent=1 // pred_fallthru
      _
    %166 = vsyncpa [#allocation4], 1
    %167 = vsyncpa [#allocation7], 1
    %168 = vsyncpa [#allocation5], 1

</llo_original>
